<compile_context>
chip_gen: v7x
topology: tpu7x:2x2x1
jax: 0.10.0
libtpu: 0.0.40
codegen_flags: <defaults>
</compile_context>

<pallas_src>
import functools

import jax
import jax.numpy as jnp
from jax import lax
from jax.experimental import pallas as pl
from jax.experimental.pallas import tpu as pltpu

# ---- physical constants from NSLoss.__init__ ----
R_GAS = 8.314
M_AIR = 0.02897
NU0 = 1.458e-06
T0 = 288.15
S_SUTH = 110.4
R_EARTH = 6378.137 * 1000.0

GEOINFO = {
    "36la+": {"lat": 0.25},
    "1la-": {"lat": -0.25},
    "7l+": {"lon": 0.25},
    "61l-": {"lon": -0.25},
}
D_LAT = (GEOINFO["36la+"]["lat"] - GEOINFO["1la-"]["lat"]) * R_EARTH / 2.0
D_LON = (GEOINFO["7l+"]["lon"] - GEOINFO["61l-"]["lon"]) * R_EARTH / 2.0
D_TIME = 3600.0

# ---- folded constants (reciprocal multiplies instead of constant divides) ----
INV_2DLAT = 1.0 / (2.0 * D_LAT)
INV_2DLON = 1.0 / (2.0 * D_LON)
INV_2DT = 1.0 / (2.0 * D_TIME)
INV_DLAT2 = 1.0 / (D_LAT * D_LAT)
INV_DLON2 = 1.0 / (D_LON * D_LON)
P_SCALE_Y = 1000.0 * INV_2DLAT          # folds the x1000 pressure scale
P_SCALE_X = 1000.0 * INV_2DLON
DENS_COEF = 1000.0 * M_AIR / R_GAS      # dens = v5 * DENS_COEF / T_k
VISC_COEF = NU0 * (T0 + S_SUTH)
INV_T0 = 1.0 / T0

# Only these original channels are read by the loss; they are remapped to a
# compact channel-major layout.  The 4 shifted channels are appended after.
USED_CHANNELS = (0, 3, 4, 5, 7, 8, 9, 10, 13, 14, 15, 18, 19, 20, 23, 24)
CH = {c: i for i, c in enumerate(USED_CHANNELS)}
IDX_U1 = len(USED_CHANNELS) + 0
IDX_U2 = len(USED_CHANNELS) + 1
IDX_V1 = len(USED_CHANNELS) + 2
IDX_V2 = len(USED_CHANNELS) + 3
C_EXT = len(USED_CHANNELS) + 4          # 20 packed channels

LANE = 128
CHUNK_R = 8          # sublane rows per inner compute step -> 1 vreg per value
MAX_TILE_R = 1024    # ~10.5 MB block; ~21 MB double-buffered (fits 32 MiB VMEM)


def nsloss_kernel(vals_ref, out_ref, *, tile_r):
    """vals_ref: (C_EXT, tile_r, 128) f32.  out_ref: (1, 8, 128) partial sums."""
    nchunks = tile_r // CHUNK_R
    unroll = 4 if nchunks % 4 == 0 else (2 if nchunks % 2 == 0 else 1)

    def chunk_residual(r0):
        def ch(k):  # (CHUNK_R, 128) dense sub-block of packed channel k
            return vals_ref[k, pl.ds(r0, CHUNK_R), :]

        # IdealGasDensity + Viscosity (Sutherland).  Exact divides: the kernel
        # is HBM-bound, so the extra VALU/EUP work is free and matches the
        # PyTorch reference more closely than approx reciprocals.
        T_k = ch(CH[7]) + 273.15
        dens = ch(CH[5]) * DENS_COEF / T_k
        t_ratio = T_k * INV_T0
        visc = (VISC_COEF / (T_k + S_SUTH)) * (t_ratio * jnp.sqrt(t_ratio))

        # Pressure gradients (x1000 folded into the constants).
        prime_p_y = (ch(CH[15]) - ch(CH[0])) * P_SCALE_Y
        prime_p_x = (ch(CH[10]) - ch(CH[20])) * P_SCALE_X

        sx = ch(CH[8])
        sy = ch(CH[9])
        u_xp = ch(CH[13])
        u_xm = ch(CH[23])
        u_yp = ch(CH[18])
        u_ym = ch(CH[3])
        v_xp = ch(CH[14])
        v_xm = ch(CH[24])
        v_yp = ch(CH[19])
        v_ym = ch(CH[4])

        # Time derivatives use the pre-shifted (roll +/-1 + edge fix) channels.
        prime_u_t = (ch(IDX_U1) - ch(IDX_U2)) * INV_2DT
        prime_v_t = (ch(IDX_V1) - ch(IDX_V2)) * INV_2DT

        prime_u_x = (u_xp - u_xm) * INV_2DLON
        prime_u_y = (u_yp - u_ym) * INV_2DLAT
        prime2_u_x = (u_xp - 2.0 * sx + u_xm) * INV_DLON2
        prime2_u_y = (u_yp - 2.0 * sx + u_ym) * INV_DLAT2

        prime_v_x = (v_xp - v_xm) * INV_2DLON
        prime_v_y = (v_yp - v_ym) * INV_2DLAT
        prime2_v_x = (v_xp - 2.0 * sy + v_xm) * INV_DLON2
        prime2_v_y = (v_yp - 2.0 * sy + v_ym) * INV_DLAT2

        Lx = (dens * (prime_u_t + sx * prime_u_x + sy * prime_u_y)
              + prime_p_x - visc * (prime2_u_x + prime2_u_y))
        Ly = (dens * (prime_v_t + sx * prime_v_x + sy * prime_v_y)
              + prime_p_y - visc * (prime2_v_x + prime2_v_y))
        return Lx * Lx + Ly * Ly

    def body(step, acc):
        base = step * unroll
        # Manual static unroll: statically-addressed (8,128) loads, short live
        # ranges, no reliance on scan-unroll remainder handling inside Pallas.
        for u in range(unroll):
            r0 = pl.multiple_of((base + u) * CHUNK_R, CHUNK_R)
            acc = acc + chunk_residual(r0)
        return acc

    acc = lax.fori_loop(0, nchunks // unroll, body,
                        jnp.zeros((CHUNK_R, LANE), jnp.float32))
    out_ref[...] = acc[None, :, :]


@functools.partial(jax.jit, static_argnames=("tile_r",))
def nsloss_pallas(values, tile_r=None):
    vals = jnp.squeeze(values, axis=0).astype(jnp.float32)   # (N, C)
    n = vals.shape[0]

    # Rolled + edge-fixed speed channels (tiny (N,) vectors; computed once in
    # the wrapper so the Pallas kernel stays purely pointwise -> no halos).
    sx = vals[:, 8]
    sy = vals[:, 9]
    u_1 = jnp.roll(sx, 1)
    u_1 = u_1.at[-1].set(u_1[-2])
    u_2 = jnp.roll(sx, -1)
    u_2 = u_2.at[0].set(u_2[1])
    v_1 = jnp.roll(sy, 1)
    v_1 = v_1.at[-1].set(v_1[-2])
    v_2 = jnp.roll(sy, -1)
    v_2 = v_2.at[0].set(v_2[1])

    r_needed = -(-n // LANE)
    if tile_r is None:
        # Large tiles amortize the ~0.35 us per-grid-step overhead and grow the
        # per-channel DMA chunks; capped so 2x blocks fit a 32 MiB VMEM budget
        # (safe on v7x's 64 MiB/TC as well as v5e/v6e).
        tile_r = MAX_TILE_R if r_needed >= MAX_TILE_R \
            else ((r_needed + CHUNK_R - 1) // CHUNK_R) * CHUNK_R
    tile_r = max(CHUNK_R, (tile_r // CHUNK_R) * CHUNK_R)
    num_tiles = -(-r_needed // tile_r)
    r_total = num_tiles * tile_r
    pad = r_total * LANE - n

    # Pack only the used channels, channel-major / sublane-lane dense, in ONE
    # producer pass: pad each 1-D channel row *before* stacking so XLA can fuse
    # slice + pad + concat into a single HBM write; the trailing reshape to
    # (C_EXT, r_total, 128) is a bitcast.  Zero padding is numerically inert
    # (padded rows give Lx = Ly = 0); the true N is divided out at the end.
    def row(col):
        return jnp.pad(col, (0, pad))

    rows = ([row(vals[:, k]) for k in USED_CHANNELS]
            + [row(u_1), row(u_2), row(v_1), row(v_2)])
    ext = jnp.stack(rows, axis=0).reshape(C_EXT, r_total, LANE)

    kernel = functools.partial(nsloss_kernel, tile_r=tile_r)
    partials = pl.pallas_call(
        kernel,
        out_shape=jax.ShapeDtypeStruct((num_tiles, CHUNK_R, LANE), jnp.float32),
        grid=(num_tiles,),
        in_specs=[pl.BlockSpec((C_EXT, tile_r, LANE), lambda i: (0, i, 0))],
        out_specs=pl.BlockSpec((1, CHUNK_R, LANE), lambda i: (i, 0, 0)),
        compiler_params=pltpu.CompilerParams(
            dimension_semantics=("parallel",),
            vmem_limit_bytes=32 * 1024 * 1024),
    )(ext)

    # Tiny final reduction of per-tile partial sums; divide by the true N.
    return jnp.sum(partials) / n


def nsloss_reference(values):
    """Pure-JAX mirror of the PyTorch forward for validation."""
    v = jnp.squeeze(values, axis=0).astype(jnp.float32)  # (N, C)

    T_k = v[:, 7] + 273.15
    dens = (v[:, 5] * 1000.0) * M_AIR / (R_GAS * T_k)
    prime_p_y = (v[:, 15] * 1000.0 - v[:, 0] * 1000.0) / (2.0 * D_LAT)
    prime_p_x = (v[:, 10] * 1000.0 - v[:, 20] * 1000.0) / (2.0 * D_LON)
    visc = NU0 * (T0 + S_SUTH) / (T_k + S_SUTH) * (T_k / T0) ** 1.5

    sx, sy = v[:, 8], v[:, 9]
    u_1 = jnp.roll(sx, 1).at[-1].set(jnp.roll(sx, 1)[-2])
    u_2 = jnp.roll(sx, -1).at[0].set(jnp.roll(sx, -1)[1])
    v_1 = jnp.roll(sy, 1).at[-1].set(jnp.roll(sy, 1)[-2])
    v_2 = jnp.roll(sy, -1).at[0].set(jnp.roll(sy, -1)[1])

    prime_u_t = (u_1 - u_2) / (2.0 * D_TIME)
    prime_v_t = (v_1 - v_2) / (2.0 * D_TIME)
    prime_u_x = (v[:, 13] - v[:, 23]) / (2.0 * D_LON)
    prime_u_y = (v[:, 18] - v[:, 3]) / (2.0 * D_LAT)
    prime2_u_x = (v[:, 13] - 2.0 * v[:, 8] + v[:, 23]) / D_LON ** 2
    prime2_u_y = (v[:, 18] - 2.0 * v[:, 8] + v[:, 3]) / D_LAT ** 2
    prime_v_x = (v[:, 14] - v[:, 24]) / (2.0 * D_LON)
    prime_v_y = (v[:, 19] - v[:, 4]) / (2.0 * D_LAT)
    prime2_v_x = (v[:, 14] - 2.0 * v[:, 9] + v[:, 24]) / D_LON ** 2
    prime2_v_y = (v[:, 19] - 2.0 * v[:, 9] + v[:, 4]) / D_LAT ** 2

    Lx = dens * (prime_u_t + sx * prime_u_x + sy * prime_u_y) \
        + prime_p_x - visc * (prime2_u_x + prime2_u_y)
    Ly = dens * (prime_v_t + sx * prime_v_x + sy * prime_v_y) \
        + prime_p_y - visc * (prime2_v_x + prime2_v_y)
    return jnp.mean(Lx ** 2 + Ly ** 2)


if __name__ == "__main__":
    key = jax.random.PRNGKey(0)
    N, C = 4000, 25  # 25 physical channels (indices up to 24 are read)
    values = jax.random.normal(key, (1, N, C), dtype=jnp.float32)

    # tile_r=16 exercises the multi-tile parallel grid, the unrolled inner
    # chunk loop, and the zero-padded tail; the second call uses the default
    # (large-tile) configuration.
    out_small = nsloss_pallas(values, tile_r=16)
    jax.block_until_ready(out_small)
    out_default = nsloss_pallas(values)
    jax.block_until_ready(out_default)

    ref = float(jax.block_until_ready(nsloss_reference(values)))
    tol = 2e-3 * abs(ref) + 1e-12
    for out in (out_small, out_default):
        err = abs(float(out) - ref)
        assert err <= tol, f"mismatch: pallas={float(out)} ref={ref} err={err}"

    print("KERNEL_OK")
</pallas_src>

<mosaic_0001>
module attributes {stable_mosaic.version = 11 : i64} {
  func.func @nsloss_kernel(%arg0: i32, %arg1: memref<20x16x128xf32, #tpu.memory_space<vmem>>, %arg2: memref<1x8x128xf32, #tpu.memory_space<vmem>>) attributes {dimension_semantics = [#tpu.dimension_semantics<parallel>], iteration_bounds = array<i64: 2>, scalar_prefetch = 0 : i64, scratch_operands = 0 : i64, tpu.core_type = #tpu.core_type<tc>, window_params = [{transform_indices = @transform_0, window_bounds = array<i64: 20, 16, 128>}, {transform_indices = @transform_1, window_bounds = array<i64: 1, 8, 128>}]} {
    %cst = arith.constant 0.000000e+00 : f32
    %0 = vector.broadcast %cst : f32 to vector<8x128xf32>
    %c0_i32 = arith.constant 0 : i32
    %c2_i32 = arith.constant 2 : i32
    %1 = arith.muli %c0_i32, %c2_i32 : i32
    %c0_i32_0 = arith.constant 0 : i32
    %2 = arith.addi %1, %c0_i32_0 : i32
    %c8_i32 = arith.constant 8 : i32
    %3 = arith.muli %2, %c8_i32 : i32
    %4 = tpu.assume_multiple %3, 8 : i32
    %c4 = arith.constant 4 : index
    %5 = arith.index_cast %4 : i32 to index
    %c0 = arith.constant 0 : index
    %6 = vector.load %arg1[%c4, %5, %c0] : memref<20x16x128xf32, #tpu.memory_space<vmem>>, vector<1x8x128xf32>
    %7 = vector.shape_cast %6 : vector<1x8x128xf32> to vector<8x128xf32>
    %cst_1 = arith.constant 2.731500e+02 : f32
    %8 = vector.broadcast %cst_1 : f32 to vector<8x128xf32>
    %9 = arith.addf %7, %8 : vector<8x128xf32>
    %c3 = arith.constant 3 : index
    %10 = arith.index_cast %4 : i32 to index
    %c0_2 = arith.constant 0 : index
    %11 = vector.load %arg1[%c3, %10, %c0_2] : memref<20x16x128xf32, #tpu.memory_space<vmem>>, vector<1x8x128xf32>
    %12 = vector.shape_cast %11 : vector<1x8x128xf32> to vector<8x128xf32>
    %cst_3 = arith.constant 3.48448396 : f32
    %13 = vector.broadcast %cst_3 : f32 to vector<8x128xf32>
    %14 = arith.mulf %12, %13 : vector<8x128xf32>
    %15 = arith.divf %14, %9 : vector<8x128xf32>
    %cst_4 = arith.constant 0.00347041478 : f32
    %16 = vector.broadcast %cst_4 : f32 to vector<8x128xf32>
    %17 = arith.mulf %9, %16 : vector<8x128xf32>
    %cst_5 = arith.constant 1.104000e+02 : f32
    %18 = vector.broadcast %cst_5 : f32 to vector<8x128xf32>
    %19 = arith.addf %9, %18 : vector<8x128xf32>
    %cst_6 = arith.constant 5.81085915E-4 : f32
    %20 = vector.broadcast %cst_6 : f32 to vector<8x128xf32>
    %21 = arith.divf %20, %19 : vector<8x128xf32>
    %22 = math.sqrt %17 : vector<8x128xf32>
    %23 = arith.mulf %17, %22 : vector<8x128xf32>
    %24 = arith.mulf %21, %23 : vector<8x128xf32>
    %c10 = arith.constant 10 : index
    %25 = arith.index_cast %4 : i32 to index
    %c0_7 = arith.constant 0 : index
    %26 = vector.load %arg1[%c10, %25, %c0_7] : memref<20x16x128xf32, #tpu.memory_space<vmem>>, vector<1x8x128xf32>
    %27 = vector.shape_cast %26 : vector<1x8x128xf32> to vector<8x128xf32>
    %c0_8 = arith.constant 0 : index
    %28 = arith.index_cast %4 : i32 to index
    %c0_9 = arith.constant 0 : index
    %29 = vector.load %arg1[%c0_8, %28, %c0_9] : memref<20x16x128xf32, #tpu.memory_space<vmem>>, vector<1x8x128xf32>
    %30 = vector.shape_cast %29 : vector<1x8x128xf32> to vector<8x128xf32>
    %31 = arith.subf %27, %30 : vector<8x128xf32>
    %cst_10 = arith.constant 3.13571189E-4 : f32
    %32 = vector.broadcast %cst_10 : f32 to vector<8x128xf32>
    %33 = arith.mulf %31, %32 : vector<8x128xf32>
    %c7 = arith.constant 7 : index
    %34 = arith.index_cast %4 : i32 to index
    %c0_11 = arith.constant 0 : index
    %35 = vector.load %arg1[%c7, %34, %c0_11] : memref<20x16x128xf32, #tpu.memory_space<vmem>>, vector<1x8x128xf32>
    %36 = vector.shape_cast %35 : vector<1x8x128xf32> to vector<8x128xf32>
    %c13 = arith.constant 13 : index
    %37 = arith.index_cast %4 : i32 to index
    %c0_12 = arith.constant 0 : index
    %38 = vector.load %arg1[%c13, %37, %c0_12] : memref<20x16x128xf32, #tpu.memory_space<vmem>>, vector<1x8x128xf32>
    %39 = vector.shape_cast %38 : vector<1x8x128xf32> to vector<8x128xf32>
    %40 = arith.subf %36, %39 : vector<8x128xf32>
    %cst_13 = arith.constant 3.13571189E-4 : f32
    %41 = vector.broadcast %cst_13 : f32 to vector<8x128xf32>
    %42 = arith.mulf %40, %41 : vector<8x128xf32>
    %c5 = arith.constant 5 : index
    %43 = arith.index_cast %4 : i32 to index
    %c0_14 = arith.constant 0 : index
    %44 = vector.load %arg1[%c5, %43, %c0_14] : memref<20x16x128xf32, #tpu.memory_space<vmem>>, vector<1x8x128xf32>
    %45 = vector.shape_cast %44 : vector<1x8x128xf32> to vector<8x128xf32>
    %c6 = arith.constant 6 : index
    %46 = arith.index_cast %4 : i32 to index
    %c0_15 = arith.constant 0 : index
    %47 = vector.load %arg1[%c6, %46, %c0_15] : memref<20x16x128xf32, #tpu.memory_space<vmem>>, vector<1x8x128xf32>
    %48 = vector.shape_cast %47 : vector<1x8x128xf32> to vector<8x128xf32>
    %c8 = arith.constant 8 : index
    %49 = arith.index_cast %4 : i32 to index
    %c0_16 = arith.constant 0 : index
    %50 = vector.load %arg1[%c8, %49, %c0_16] : memref<20x16x128xf32, #tpu.memory_space<vmem>>, vector<1x8x128xf32>
    %51 = vector.shape_cast %50 : vector<1x8x128xf32> to vector<8x128xf32>
    %c14 = arith.constant 14 : index
    %52 = arith.index_cast %4 : i32 to index
    %c0_17 = arith.constant 0 : index
    %53 = vector.load %arg1[%c14, %52, %c0_17] : memref<20x16x128xf32, #tpu.memory_space<vmem>>, vector<1x8x128xf32>
    %54 = vector.shape_cast %53 : vector<1x8x128xf32> to vector<8x128xf32>
    %c11 = arith.constant 11 : index
    %55 = arith.index_cast %4 : i32 to index
    %c0_18 = arith.constant 0 : index
    %56 = vector.load %arg1[%c11, %55, %c0_18] : memref<20x16x128xf32, #tpu.memory_space<vmem>>, vector<1x8x128xf32>
    %57 = vector.shape_cast %56 : vector<1x8x128xf32> to vector<8x128xf32>
    %c1 = arith.constant 1 : index
    %58 = arith.index_cast %4 : i32 to index
    %c0_19 = arith.constant 0 : index
    %59 = vector.load %arg1[%c1, %58, %c0_19] : memref<20x16x128xf32, #tpu.memory_space<vmem>>, vector<1x8x128xf32>
    %60 = vector.shape_cast %59 : vector<1x8x128xf32> to vector<8x128xf32>
    %c9 = arith.constant 9 : index
    %61 = arith.index_cast %4 : i32 to index
    %c0_20 = arith.constant 0 : index
    %62 = vector.load %arg1[%c9, %61, %c0_20] : memref<20x16x128xf32, #tpu.memory_space<vmem>>, vector<1x8x128xf32>
    %63 = vector.shape_cast %62 : vector<1x8x128xf32> to vector<8x128xf32>
    %c15 = arith.constant 15 : index
    %64 = arith.index_cast %4 : i32 to index
    %c0_21 = arith.constant 0 : index
    %65 = vector.load %arg1[%c15, %64, %c0_21] : memref<20x16x128xf32, #tpu.memory_space<vmem>>, vector<1x8x128xf32>
    %66 = vector.shape_cast %65 : vector<1x8x128xf32> to vector<8x128xf32>
    %c12 = arith.constant 12 : index
    %67 = arith.index_cast %4 : i32 to index
    %c0_22 = arith.constant 0 : index
    %68 = vector.load %arg1[%c12, %67, %c0_22] : memref<20x16x128xf32, #tpu.memory_space<vmem>>, vector<1x8x128xf32>
    %69 = vector.shape_cast %68 : vector<1x8x128xf32> to vector<8x128xf32>
    %c2 = arith.constant 2 : index
    %70 = arith.index_cast %4 : i32 to index
    %c0_23 = arith.constant 0 : index
    %71 = vector.load %arg1[%c2, %70, %c0_23] : memref<20x16x128xf32, #tpu.memory_space<vmem>>, vector<1x8x128xf32>
    %72 = vector.shape_cast %71 : vector<1x8x128xf32> to vector<8x128xf32>
    %c16 = arith.constant 16 : index
    %73 = arith.index_cast %4 : i32 to index
    %c0_24 = arith.constant 0 : index
    %74 = vector.load %arg1[%c16, %73, %c0_24] : memref<20x16x128xf32, #tpu.memory_space<vmem>>, vector<1x8x128xf32>
    %75 = vector.shape_cast %74 : vector<1x8x128xf32> to vector<8x128xf32>
    %c17 = arith.constant 17 : index
    %76 = arith.index_cast %4 : i32 to index
    %c0_25 = arith.constant 0 : index
    %77 = vector.load %arg1[%c17, %76, %c0_25] : memref<20x16x128xf32, #tpu.memory_space<vmem>>, vector<1x8x128xf32>
    %78 = vector.shape_cast %77 : vector<1x8x128xf32> to vector<8x128xf32>
    %79 = arith.subf %75, %78 : vector<8x128xf32>
    %cst_26 = arith.constant 1.38888892E-4 : f32
    %80 = vector.broadcast %cst_26 : f32 to vector<8x128xf32>
    %81 = arith.mulf %79, %80 : vector<8x128xf32>
    %c18 = arith.constant 18 : index
    %82 = arith.index_cast %4 : i32 to index
    %c0_27 = arith.constant 0 : index
    %83 = vector.load %arg1[%c18, %82, %c0_27] : memref<20x16x128xf32, #tpu.memory_space<vmem>>, vector<1x8x128xf32>
    %84 = vector.shape_cast %83 : vector<1x8x128xf32> to vector<8x128xf32>
    %c19 = arith.constant 19 : index
    %85 = arith.index_cast %4 : i32 to index
    %c0_28 = arith.constant 0 : index
    %86 = vector.load %arg1[%c19, %85, %c0_28] : memref<20x16x128xf32, #tpu.memory_space<vmem>>, vector<1x8x128xf32>
    %87 = vector.shape_cast %86 : vector<1x8x128xf32> to vector<8x128xf32>
    %88 = arith.subf %84, %87 : vector<8x128xf32>
    %cst_29 = arith.constant 1.38888892E-4 : f32
    %89 = vector.broadcast %cst_29 : f32 to vector<8x128xf32>
    %90 = arith.mulf %88, %89 : vector<8x128xf32>
    %91 = arith.subf %51, %54 : vector<8x128xf32>
    %cst_30 = arith.constant 3.13571178E-7 : f32
    %92 = vector.broadcast %cst_30 : f32 to vector<8x128xf32>
    %93 = arith.mulf %91, %92 : vector<8x128xf32>
    %94 = arith.subf %57, %60 : vector<8x128xf32>
    %cst_31 = arith.constant 3.13571178E-7 : f32
    %95 = vector.broadcast %cst_31 : f32 to vector<8x128xf32>
    %96 = arith.mulf %94, %95 : vector<8x128xf32>
    %cst_32 = arith.constant 2.000000e+00 : f32
    %97 = vector.broadcast %cst_32 : f32 to vector<8x128xf32>
    %98 = arith.mulf %97, %45 : vector<8x128xf32>
    %99 = arith.subf %51, %98 : vector<8x128xf32>
    %100 = arith.addf %99, %54 : vector<8x128xf32>
    %cst_33 = arith.constant 3.93307565E-13 : f32
    %101 = vector.broadcast %cst_33 : f32 to vector<8x128xf32>
    %102 = arith.mulf %100, %101 : vector<8x128xf32>
    %cst_34 = arith.constant 2.000000e+00 : f32
    %103 = vector.broadcast %cst_34 : f32 to vector<8x128xf32>
    %104 = arith.mulf %103, %45 : vector<8x128xf32>
    %105 = arith.subf %57, %104 : vector<8x128xf32>
    %106 = arith.addf %105, %60 : vector<8x128xf32>
    %cst_35 = arith.constant 3.93307565E-13 : f32
    %107 = vector.broadcast %cst_35 : f32 to vector<8x128xf32>
    %108 = arith.mulf %106, %107 : vector<8x128xf32>
    %109 = arith.subf %63, %66 : vector<8x128xf32>
    %cst_36 = arith.constant 3.13571178E-7 : f32
    %110 = vector.broadcast %cst_36 : f32 to vector<8x128xf32>
    %111 = arith.mulf %109, %110 : vector<8x128xf32>
    %112 = arith.subf %69, %72 : vector<8x128xf32>
    %cst_37 = arith.constant 3.13571178E-7 : f32
    %113 = vector.broadcast %cst_37 : f32 to vector<8x128xf32>
    %114 = arith.mulf %112, %113 : vector<8x128xf32>
    %cst_38 = arith.constant 2.000000e+00 : f32
    %115 = vector.broadcast %cst_38 : f32 to vector<8x128xf32>
    %116 = arith.mulf %115, %48 : vector<8x128xf32>
    %117 = arith.subf %63, %116 : vector<8x128xf32>
    %118 = arith.addf %117, %66 : vector<8x128xf32>
    %cst_39 = arith.constant 3.93307565E-13 : f32
    %119 = vector.broadcast %cst_39 : f32 to vector<8x128xf32>
    %120 = arith.mulf %118, %119 : vector<8x128xf32>
    %cst_40 = arith.constant 2.000000e+00 : f32
    %121 = vector.broadcast %cst_40 : f32 to vector<8x128xf32>
    %122 = arith.mulf %121, %48 : vector<8x128xf32>
    %123 = arith.subf %69, %122 : vector<8x128xf32>
    %124 = arith.addf %123, %72 : vector<8x128xf32>
    %cst_41 = arith.constant 3.93307565E-13 : f32
    %125 = vector.broadcast %cst_41 : f32 to vector<8x128xf32>
    %126 = arith.mulf %124, %125 : vector<8x128xf32>
    %127 = arith.mulf %45, %93 : vector<8x128xf32>
    %128 = arith.addf %81, %127 : vector<8x128xf32>
    %129 = arith.mulf %48, %96 : vector<8x128xf32>
    %130 = arith.addf %128, %129 : vector<8x128xf32>
    %131 = arith.mulf %15, %130 : vector<8x128xf32>
    %132 = arith.addf %131, %42 : vector<8x128xf32>
    %133 = arith.addf %102, %108 : vector<8x128xf32>
    %134 = arith.mulf %24, %133 : vector<8x128xf32>
    %135 = arith.subf %132, %134 : vector<8x128xf32>
    %136 = arith.mulf %45, %111 : vector<8x128xf32>
    %137 = arith.addf %90, %136 : vector<8x128xf32>
    %138 = arith.mulf %48, %114 : vector<8x128xf32>
    %139 = arith.addf %137, %138 : vector<8x128xf32>
    %140 = arith.mulf %15, %139 : vector<8x128xf32>
    %141 = arith.addf %140, %33 : vector<8x128xf32>
    %142 = arith.addf %120, %126 : vector<8x128xf32>
    %143 = arith.mulf %24, %142 : vector<8x128xf32>
    %144 = arith.subf %141, %143 : vector<8x128xf32>
    %145 = arith.mulf %135, %135 : vector<8x128xf32>
    %146 = arith.mulf %144, %144 : vector<8x128xf32>
    %147 = arith.addf %145, %146 : vector<8x128xf32>
    %148 = arith.addf %0, %147 : vector<8x128xf32>
    %c1_i32 = arith.constant 1 : i32
    %149 = arith.addi %1, %c1_i32 : i32
    %c8_i32_42 = arith.constant 8 : i32
    %150 = arith.muli %149, %c8_i32_42 : i32
    %151 = tpu.assume_multiple %150, 8 : i32
    %c4_43 = arith.constant 4 : index
    %152 = arith.index_cast %151 : i32 to index
    %c0_44 = arith.constant 0 : index
    %153 = vector.load %arg1[%c4_43, %152, %c0_44] : memref<20x16x128xf32, #tpu.memory_space<vmem>>, vector<1x8x128xf32>
    %154 = vector.shape_cast %153 : vector<1x8x128xf32> to vector<8x128xf32>
    %cst_45 = arith.constant 2.731500e+02 : f32
    %155 = vector.broadcast %cst_45 : f32 to vector<8x128xf32>
    %156 = arith.addf %154, %155 : vector<8x128xf32>
    %c3_46 = arith.constant 3 : index
    %157 = arith.index_cast %151 : i32 to index
    %c0_47 = arith.constant 0 : index
    %158 = vector.load %arg1[%c3_46, %157, %c0_47] : memref<20x16x128xf32, #tpu.memory_space<vmem>>, vector<1x8x128xf32>
    %159 = vector.shape_cast %158 : vector<1x8x128xf32> to vector<8x128xf32>
    %cst_48 = arith.constant 3.48448396 : f32
    %160 = vector.broadcast %cst_48 : f32 to vector<8x128xf32>
    %161 = arith.mulf %159, %160 : vector<8x128xf32>
    %162 = arith.divf %161, %156 : vector<8x128xf32>
    %cst_49 = arith.constant 0.00347041478 : f32
    %163 = vector.broadcast %cst_49 : f32 to vector<8x128xf32>
    %164 = arith.mulf %156, %163 : vector<8x128xf32>
    %cst_50 = arith.constant 1.104000e+02 : f32
    %165 = vector.broadcast %cst_50 : f32 to vector<8x128xf32>
    %166 = arith.addf %156, %165 : vector<8x128xf32>
    %cst_51 = arith.constant 5.81085915E-4 : f32
    %167 = vector.broadcast %cst_51 : f32 to vector<8x128xf32>
    %168 = arith.divf %167, %166 : vector<8x128xf32>
    %169 = math.sqrt %164 : vector<8x128xf32>
    %170 = arith.mulf %164, %169 : vector<8x128xf32>
    %171 = arith.mulf %168, %170 : vector<8x128xf32>
    %c10_52 = arith.constant 10 : index
    %172 = arith.index_cast %151 : i32 to index
    %c0_53 = arith.constant 0 : index
    %173 = vector.load %arg1[%c10_52, %172, %c0_53] : memref<20x16x128xf32, #tpu.memory_space<vmem>>, vector<1x8x128xf32>
    %174 = vector.shape_cast %173 : vector<1x8x128xf32> to vector<8x128xf32>
    %c0_54 = arith.constant 0 : index
    %175 = arith.index_cast %151 : i32 to index
    %c0_55 = arith.constant 0 : index
    %176 = vector.load %arg1[%c0_54, %175, %c0_55] : memref<20x16x128xf32, #tpu.memory_space<vmem>>, vector<1x8x128xf32>
    %177 = vector.shape_cast %176 : vector<1x8x128xf32> to vector<8x128xf32>
    %178 = arith.subf %174, %177 : vector<8x128xf32>
    %cst_56 = arith.constant 3.13571189E-4 : f32
    %179 = vector.broadcast %cst_56 : f32 to vector<8x128xf32>
    %180 = arith.mulf %178, %179 : vector<8x128xf32>
    %c7_57 = arith.constant 7 : index
    %181 = arith.index_cast %151 : i32 to index
    %c0_58 = arith.constant 0 : index
    %182 = vector.load %arg1[%c7_57, %181, %c0_58] : memref<20x16x128xf32, #tpu.memory_space<vmem>>, vector<1x8x128xf32>
    %183 = vector.shape_cast %182 : vector<1x8x128xf32> to vector<8x128xf32>
    %c13_59 = arith.constant 13 : index
    %184 = arith.index_cast %151 : i32 to index
    %c0_60 = arith.constant 0 : index
    %185 = vector.load %arg1[%c13_59, %184, %c0_60] : memref<20x16x128xf32, #tpu.memory_space<vmem>>, vector<1x8x128xf32>
    %186 = vector.shape_cast %185 : vector<1x8x128xf32> to vector<8x128xf32>
    %187 = arith.subf %183, %186 : vector<8x128xf32>
    %cst_61 = arith.constant 3.13571189E-4 : f32
    %188 = vector.broadcast %cst_61 : f32 to vector<8x128xf32>
    %189 = arith.mulf %187, %188 : vector<8x128xf32>
    %c5_62 = arith.constant 5 : index
    %190 = arith.index_cast %151 : i32 to index
    %c0_63 = arith.constant 0 : index
    %191 = vector.load %arg1[%c5_62, %190, %c0_63] : memref<20x16x128xf32, #tpu.memory_space<vmem>>, vector<1x8x128xf32>
    %192 = vector.shape_cast %191 : vector<1x8x128xf32> to vector<8x128xf32>
    %c6_64 = arith.constant 6 : index
    %193 = arith.index_cast %151 : i32 to index
    %c0_65 = arith.constant 0 : index
    %194 = vector.load %arg1[%c6_64, %193, %c0_65] : memref<20x16x128xf32, #tpu.memory_space<vmem>>, vector<1x8x128xf32>
    %195 = vector.shape_cast %194 : vector<1x8x128xf32> to vector<8x128xf32>
    %c8_66 = arith.constant 8 : index
    %196 = arith.index_cast %151 : i32 to index
    %c0_67 = arith.constant 0 : index
    %197 = vector.load %arg1[%c8_66, %196, %c0_67] : memref<20x16x128xf32, #tpu.memory_space<vmem>>, vector<1x8x128xf32>
    %198 = vector.shape_cast %197 : vector<1x8x128xf32> to vector<8x128xf32>
    %c14_68 = arith.constant 14 : index
    %199 = arith.index_cast %151 : i32 to index
    %c0_69 = arith.constant 0 : index
    %200 = vector.load %arg1[%c14_68, %199, %c0_69] : memref<20x16x128xf32, #tpu.memory_space<vmem>>, vector<1x8x128xf32>
    %201 = vector.shape_cast %200 : vector<1x8x128xf32> to vector<8x128xf32>
    %c11_70 = arith.constant 11 : index
    %202 = arith.index_cast %151 : i32 to index
    %c0_71 = arith.constant 0 : index
    %203 = vector.load %arg1[%c11_70, %202, %c0_71] : memref<20x16x128xf32, #tpu.memory_space<vmem>>, vector<1x8x128xf32>
    %204 = vector.shape_cast %203 : vector<1x8x128xf32> to vector<8x128xf32>
    %c1_72 = arith.constant 1 : index
    %205 = arith.index_cast %151 : i32 to index
    %c0_73 = arith.constant 0 : index
    %206 = vector.load %arg1[%c1_72, %205, %c0_73] : memref<20x16x128xf32, #tpu.memory_space<vmem>>, vector<1x8x128xf32>
    %207 = vector.shape_cast %206 : vector<1x8x128xf32> to vector<8x128xf32>
    %c9_74 = arith.constant 9 : index
    %208 = arith.index_cast %151 : i32 to index
    %c0_75 = arith.constant 0 : index
    %209 = vector.load %arg1[%c9_74, %208, %c0_75] : memref<20x16x128xf32, #tpu.memory_space<vmem>>, vector<1x8x128xf32>
    %210 = vector.shape_cast %209 : vector<1x8x128xf32> to vector<8x128xf32>
    %c15_76 = arith.constant 15 : index
    %211 = arith.index_cast %151 : i32 to index
    %c0_77 = arith.constant 0 : index
    %212 = vector.load %arg1[%c15_76, %211, %c0_77] : memref<20x16x128xf32, #tpu.memory_space<vmem>>, vector<1x8x128xf32>
    %213 = vector.shape_cast %212 : vector<1x8x128xf32> to vector<8x128xf32>
    %c12_78 = arith.constant 12 : index
    %214 = arith.index_cast %151 : i32 to index
    %c0_79 = arith.constant 0 : index
    %215 = vector.load %arg1[%c12_78, %214, %c0_79] : memref<20x16x128xf32, #tpu.memory_space<vmem>>, vector<1x8x128xf32>
    %216 = vector.shape_cast %215 : vector<1x8x128xf32> to vector<8x128xf32>
    %c2_80 = arith.constant 2 : index
    %217 = arith.index_cast %151 : i32 to index
    %c0_81 = arith.constant 0 : index
    %218 = vector.load %arg1[%c2_80, %217, %c0_81] : memref<20x16x128xf32, #tpu.memory_space<vmem>>, vector<1x8x128xf32>
    %219 = vector.shape_cast %218 : vector<1x8x128xf32> to vector<8x128xf32>
    %c16_82 = arith.constant 16 : index
    %220 = arith.index_cast %151 : i32 to index
    %c0_83 = arith.constant 0 : index
    %221 = vector.load %arg1[%c16_82, %220, %c0_83] : memref<20x16x128xf32, #tpu.memory_space<vmem>>, vector<1x8x128xf32>
    %222 = vector.shape_cast %221 : vector<1x8x128xf32> to vector<8x128xf32>
    %c17_84 = arith.constant 17 : index
    %223 = arith.index_cast %151 : i32 to index
    %c0_85 = arith.constant 0 : index
    %224 = vector.load %arg1[%c17_84, %223, %c0_85] : memref<20x16x128xf32, #tpu.memory_space<vmem>>, vector<1x8x128xf32>
    %225 = vector.shape_cast %224 : vector<1x8x128xf32> to vector<8x128xf32>
    %226 = arith.subf %222, %225 : vector<8x128xf32>
    %cst_86 = arith.constant 1.38888892E-4 : f32
    %227 = vector.broadcast %cst_86 : f32 to vector<8x128xf32>
    %228 = arith.mulf %226, %227 : vector<8x128xf32>
    %c18_87 = arith.constant 18 : index
    %229 = arith.index_cast %151 : i32 to index
    %c0_88 = arith.constant 0 : index
    %230 = vector.load %arg1[%c18_87, %229, %c0_88] : memref<20x16x128xf32, #tpu.memory_space<vmem>>, vector<1x8x128xf32>
    %231 = vector.shape_cast %230 : vector<1x8x128xf32> to vector<8x128xf32>
    %c19_89 = arith.constant 19 : index
    %232 = arith.index_cast %151 : i32 to index
    %c0_90 = arith.constant 0 : index
    %233 = vector.load %arg1[%c19_89, %232, %c0_90] : memref<20x16x128xf32, #tpu.memory_space<vmem>>, vector<1x8x128xf32>
    %234 = vector.shape_cast %233 : vector<1x8x128xf32> to vector<8x128xf32>
    %235 = arith.subf %231, %234 : vector<8x128xf32>
    %cst_91 = arith.constant 1.38888892E-4 : f32
    %236 = vector.broadcast %cst_91 : f32 to vector<8x128xf32>
    %237 = arith.mulf %235, %236 : vector<8x128xf32>
    %238 = arith.subf %198, %201 : vector<8x128xf32>
    %cst_92 = arith.constant 3.13571178E-7 : f32
    %239 = vector.broadcast %cst_92 : f32 to vector<8x128xf32>
    %240 = arith.mulf %238, %239 : vector<8x128xf32>
    %241 = arith.subf %204, %207 : vector<8x128xf32>
    %cst_93 = arith.constant 3.13571178E-7 : f32
    %242 = vector.broadcast %cst_93 : f32 to vector<8x128xf32>
    %243 = arith.mulf %241, %242 : vector<8x128xf32>
    %cst_94 = arith.constant 2.000000e+00 : f32
    %244 = vector.broadcast %cst_94 : f32 to vector<8x128xf32>
    %245 = arith.mulf %244, %192 : vector<8x128xf32>
    %246 = arith.subf %198, %245 : vector<8x128xf32>
    %247 = arith.addf %246, %201 : vector<8x128xf32>
    %cst_95 = arith.constant 3.93307565E-13 : f32
    %248 = vector.broadcast %cst_95 : f32 to vector<8x128xf32>
    %249 = arith.mulf %247, %248 : vector<8x128xf32>
    %cst_96 = arith.constant 2.000000e+00 : f32
    %250 = vector.broadcast %cst_96 : f32 to vector<8x128xf32>
    %251 = arith.mulf %250, %192 : vector<8x128xf32>
    %252 = arith.subf %204, %251 : vector<8x128xf32>
    %253 = arith.addf %252, %207 : vector<8x128xf32>
    %cst_97 = arith.constant 3.93307565E-13 : f32
    %254 = vector.broadcast %cst_97 : f32 to vector<8x128xf32>
    %255 = arith.mulf %253, %254 : vector<8x128xf32>
    %256 = arith.subf %210, %213 : vector<8x128xf32>
    %cst_98 = arith.constant 3.13571178E-7 : f32
    %257 = vector.broadcast %cst_98 : f32 to vector<8x128xf32>
    %258 = arith.mulf %256, %257 : vector<8x128xf32>
    %259 = arith.subf %216, %219 : vector<8x128xf32>
    %cst_99 = arith.constant 3.13571178E-7 : f32
    %260 = vector.broadcast %cst_99 : f32 to vector<8x128xf32>
    %261 = arith.mulf %259, %260 : vector<8x128xf32>
    %cst_100 = arith.constant 2.000000e+00 : f32
    %262 = vector.broadcast %cst_100 : f32 to vector<8x128xf32>
    %263 = arith.mulf %262, %195 : vector<8x128xf32>
    %264 = arith.subf %210, %263 : vector<8x128xf32>
    %265 = arith.addf %264, %213 : vector<8x128xf32>
    %cst_101 = arith.constant 3.93307565E-13 : f32
    %266 = vector.broadcast %cst_101 : f32 to vector<8x128xf32>
    %267 = arith.mulf %265, %266 : vector<8x128xf32>
    %cst_102 = arith.constant 2.000000e+00 : f32
    %268 = vector.broadcast %cst_102 : f32 to vector<8x128xf32>
    %269 = arith.mulf %268, %195 : vector<8x128xf32>
    %270 = arith.subf %216, %269 : vector<8x128xf32>
    %271 = arith.addf %270, %219 : vector<8x128xf32>
    %cst_103 = arith.constant 3.93307565E-13 : f32
    %272 = vector.broadcast %cst_103 : f32 to vector<8x128xf32>
    %273 = arith.mulf %271, %272 : vector<8x128xf32>
    %274 = arith.mulf %192, %240 : vector<8x128xf32>
    %275 = arith.addf %228, %274 : vector<8x128xf32>
    %276 = arith.mulf %195, %243 : vector<8x128xf32>
    %277 = arith.addf %275, %276 : vector<8x128xf32>
    %278 = arith.mulf %162, %277 : vector<8x128xf32>
    %279 = arith.addf %278, %189 : vector<8x128xf32>
    %280 = arith.addf %249, %255 : vector<8x128xf32>
    %281 = arith.mulf %171, %280 : vector<8x128xf32>
    %282 = arith.subf %279, %281 : vector<8x128xf32>
    %283 = arith.mulf %192, %258 : vector<8x128xf32>
    %284 = arith.addf %237, %283 : vector<8x128xf32>
    %285 = arith.mulf %195, %261 : vector<8x128xf32>
    %286 = arith.addf %284, %285 : vector<8x128xf32>
    %287 = arith.mulf %162, %286 : vector<8x128xf32>
    %288 = arith.addf %287, %180 : vector<8x128xf32>
    %289 = arith.addf %267, %273 : vector<8x128xf32>
    %290 = arith.mulf %171, %289 : vector<8x128xf32>
    %291 = arith.subf %288, %290 : vector<8x128xf32>
    %292 = arith.mulf %282, %282 : vector<8x128xf32>
    %293 = arith.mulf %291, %291 : vector<8x128xf32>
    %294 = arith.addf %292, %293 : vector<8x128xf32>
    %295 = arith.addf %148, %294 : vector<8x128xf32>
    %c1_i32_104 = arith.constant 1 : i32
    %296 = vector.shape_cast %295 : vector<8x128xf32> to vector<1x8x128xf32>
    %c0_105 = arith.constant 0 : index
    %c0_106 = arith.constant 0 : index
    %c0_107 = arith.constant 0 : index
    %297 = vector.load %arg2[%c0_105, %c0_106, %c0_107] : memref<1x8x128xf32, #tpu.memory_space<vmem>>, vector<1x8x128xf32>
    tpu.vector_store %arg2[%c0_105, %c0_106, %c0_107], %296 {strides = array<i32>} : memref<1x8x128xf32, #tpu.memory_space<vmem>>, vector<1x8x128xf32>,
    return
  }
  func.func @transform_0(%arg0: i32) -> (i32, i32, i32) {
    %c0_i32 = arith.constant 0 : i32
    %c0_i32_0 = arith.constant 0 : i32
    %c0_i32_1 = arith.constant 0 : i32
    return %c0_i32, %arg0, %c0_i32_0 : i32, i32, i32
  }
  func.func @transform_1(%arg0: i32) -> (i32, i32, i32) {
    %c0_i32 = arith.constant 0 : i32
    %c0_i32_0 = arith.constant 0 : i32
    %c0_i32_1 = arith.constant 0 : i32
    return %arg0, %c0_i32, %c0_i32_0 : i32, i32, i32
  }
}

</mosaic_0001>

<llo_original>
// kernel: nsloss_pallas.1
$region0: #{nsloss_pallas.1}
  #allocation0 [shape = 'u32[]', space=smem, size = 0x4, offset = 0x4, fixed_abs, tag = 'smem constant byte address 0x4 - core index']
  #allocation1 [shape = 'u32[144,128]{1,0:T(1,128)}', space=vmem, size = 0x12000, scoped, tag = 'internal scratch']
  %s0 = inlined_call_operand.vmem [shape: f32[20,32,128], index: 0, kind: input, shape index: {}]
  %s1 = inlined_call_operand.vmem [shape: f32[2,8,128], index: 1, kind: output, shape index: {}]
  %s2 = sld [smem:[#allocation0]]
  $region75: #{nsloss_pallas.1} parent=0
    _
  %s4 = ssub.s32 1, %s2
  %s5 = scalar_select 0, %s4, %s2
  $region1: #{nsloss_pallas.1} parent=0
    #allocation2 [shape = 'u8[327680]{0}', space=vmem, size = 0x50000, scoped, tag = 'input window, operand 0']
    loop: start=0, step=1, limit=4
    $region2: #{nsloss_pallas.1} parent=1 // loop_pre_header
      _
    $region3: #{nsloss_pallas.1} parent=1 // loop_header
      %s7 = sphi 0, %s11
      %p8 = scmp.ge.s32.totalorder %s7, 4
      %s17 = sphi 0, %s19
      %s20 = sphi 0, %s17
      %s21 = sphi 0, %s20
      %s37 = sphi 0, %s21
      %s43 = sphi 0, %s45
      %s46 = sphi 0, %s43
      %s47 = sphi 0, %s46
      %s63 = sphi 0, %s47
    $region4: #{nsloss_pallas.1} parent=1 // loop_header_branch
      %10 = sbr.rel (%p8) target = $region8
    $region5: #{nsloss_pallas.1} parent=1 // loop_body
      %s12 = ssub.s32 %s7, 1
      %s13 = ssub.s32 %s7, 2
      %s14 = sadd.s32 %s7, 1
      %s15 = ssub.s32 %s7, %s14
      %p16 = scmp.eq.s32.totalorder %s15, 0
      %s18 = sadd.s32 %s17, 1
      %s19 = scalar_select %p16, %s17, %s18
      %p22 = pneg %p16
      %p23 = scmp.eq.s32.totalorder %s7, 1
      %p24 = por %p22, %p23
      %p25 = scmp.ne.s32.totalorder %s17, %s20
      %p26 = scmp.eq.s32.totalorder %s7, 0
      %p27 = por %p25, %p26
      %p28 = scmp.ne.s32.totalorder %s17, %s20
      %p29 = scmp.eq.s32.totalorder %s12, 1
      %p30 = por %p28, %p29
      %p31 = scmp.ne.s32.totalorder %s20, %s21
      %p32 = scmp.eq.s32.totalorder %s12, 0
      %p33 = por %p31, %p32
      %p34 = scmp.ne.s32.totalorder %s20, %s21
      %p35 = scmp.eq.s32.totalorder %s13, 1
      %p36 = por %p34, %p35
      %p38 = scmp.ne.s32.totalorder %s21, %s37
      %p39 = scmp.eq.s32.totalorder %s13, 0
      %p40 = por %p38, %p39
      %s41 = ssub.s32 %s7, %s14
      %p42 = scmp.eq.s32.totalorder %s41, 0
      %s44 = sadd.s32 %s43, 1
      %s45 = scalar_select %p42, %s43, %s44
      %p48 = pneg %p42
      %p49 = scmp.eq.s32.totalorder %s7, 1
      %p50 = por %p48, %p49
      %p51 = scmp.ne.s32.totalorder %s43, %s46
      %p52 = scmp.eq.s32.totalorder %s7, 0
      %p53 = por %p51, %p52
      %p54 = scmp.ne.s32.totalorder %s43, %s46
      %p55 = scmp.eq.s32.totalorder %s12, 1
      %p56 = por %p54, %p55
      %p57 = scmp.ne.s32.totalorder %s46, %s47
      %p58 = scmp.eq.s32.totalorder %s12, 0
      %p59 = por %p57, %p58
      %p60 = scmp.ne.s32.totalorder %s46, %s47
      %p61 = scmp.eq.s32.totalorder %s13, 1
      %p62 = por %p60, %p61
      %p64 = scmp.ne.s32.totalorder %s47, %s63
      %p65 = scmp.eq.s32.totalorder %s13, 0
      %p66 = por %p64, %p65
      %p67 = scmp.le.s32.totalorder 1, %s7
      %p68 = scmp.lt.s32.totalorder %s7, 3
      %p69 = pnand %p67, %p68
      %p70 = pneg %p69
      // Predicated region
      $region9: #{nsloss_pallas.1} parent=5 // pred_check
        _
      $region10: #{nsloss_pallas.1} parent=5 // pred_check_branch
        %72 = sbr.rel (%p69) target = $region12
      $region11: #{nsloss_pallas.1} parent=5 // pred_region
        %s73 = ssub.s32 %s7, 1
      $region12: #{nsloss_pallas.1} parent=5 // pred_fallthru
        _
      %p74 = scmp.lt.s32.totalorder %s7, 2
      // Predicated region
      $region13: #{nsloss_pallas.1} parent=5 // pred_check
        %p75 = pneg %p74
      $region14: #{nsloss_pallas.1} parent=5 // pred_check_branch
        %77 = sbr.rel (%p75) target = $region16
      $region15: #{nsloss_pallas.1} parent=5 // pred_region
        // Predicated region
        $region17: #{nsloss_pallas.1} parent=15 // pred_check
          %p78 = pneg %p27
        $region18: #{nsloss_pallas.1} parent=15 // pred_check_branch
          %80 = sbr.rel (%p78) target = $region20
        $region19: #{nsloss_pallas.1} parent=15 // pred_region
          %s81 = sand.u32 %s17, 1
          %s82 = sand.u32 %s17, 1
          %s83 = smul.addr %s82, 320
          %s84 = scalar_lea.vmem [#allocation2], %s83
          %s85 = smul.u32 2, %s7
          %s86 = smul.addr %s85, 8
          %s87 = scalar_lea.vmem %s0, %s86
          // Predicated region
          $region21: #{nsloss_pallas.1} parent=19 // pred_check
            _
          $region22: #{nsloss_pallas.1} parent=19 // pred_check_branch
            %89 = sbr.rel (0) target = $region24
          $region23: #{nsloss_pallas.1} parent=19 // pred_region
            // Predicated region
            $region25: #{nsloss_pallas.1} parent=23 // pred_check
              _
            $region26: #{nsloss_pallas.1} parent=23 // pred_check_branch
              %91 = sbr.rel (0) target = $region28
            $region27: #{nsloss_pallas.1} parent=23 // pred_region
              // Predicated region
              $region40: #{nsloss_pallas.1} parent=27 // pred_check
                _
              $region41: #{nsloss_pallas.1} parent=27 // pred_check_branch
                %184 = sbr.rel (0) target = $region43
              $region42: #{nsloss_pallas.1} parent=27 // pred_region
                loop: start=0, step=1, limit=1
                $region44: #{nsloss_pallas.1} parent=42 // loop_pre_header
                  _
                $region45: #{nsloss_pallas.1} parent=42 // loop_header
                  %s186 = sphi 0, %s190
                  %p187 = scmp.ge.s32.totalorder %s186, 1
                  %s191 = sphi %s87, %s87
                  %s192 = sphi %s84, %s84
                $region46: #{nsloss_pallas.1} parent=42 // loop_header_branch
                  %189 = sbr.rel (%p187) target = $region50
                $region47: #{nsloss_pallas.1} parent=42 // loop_body
                  %v193 = vld [vmem:[%s191] sm:$0xff]
                  %194 = vst [vmem:[%s192] sm:$0xff] %v193
                  %v195 = vld [vmem:[%s191 + $0x8] sm:$0xff]
                  %196 = vst [vmem:[%s192 + $0x8] sm:$0xff] %v195
                  %v197 = vld [vmem:[%s191 + $0x20] sm:$0xff]
                  %198 = vst [vmem:[%s192 + $0x10] sm:$0xff] %v197
                  %v199 = vld [vmem:[%s191 + $0x28] sm:$0xff]
                  %200 = vst [vmem:[%s192 + $0x18] sm:$0xff] %v199
                  %v201 = vld [vmem:[%s191 + $0x40] sm:$0xff]
                  %202 = vst [vmem:[%s192 + $0x20] sm:$0xff] %v201
                  %v203 = vld [vmem:[%s191 + $0x48] sm:$0xff]
                  %204 = vst [vmem:[%s192 + $0x28] sm:$0xff] %v203
                  %v205 = vld [vmem:[%s191 + $0x60] sm:$0xff]
                  %206 = vst [vmem:[%s192 + $0x30] sm:$0xff] %v205
                  %v207 = vld [vmem:[%s191 + $0x68] sm:$0xff]
                  %208 = vst [vmem:[%s192 + $0x38] sm:$0xff] %v207
                  %v209 = vld [vmem:[%s191 + $0x80] sm:$0xff]
                  %210 = vst [vmem:[%s192 + $0x40] sm:$0xff] %v209
                  %v211 = vld [vmem:[%s191 + $0x88] sm:$0xff]
                  %212 = vst [vmem:[%s192 + $0x48] sm:$0xff] %v211
                  %v213 = vld [vmem:[%s191 + $0xa0] sm:$0xff]
                  %214 = vst [vmem:[%s192 + $0x50] sm:$0xff] %v213
                  %v215 = vld [vmem:[%s191 + $0xa8] sm:$0xff]
                  %216 = vst [vmem:[%s192 + $0x58] sm:$0xff] %v215
                  %v217 = vld [vmem:[%s191 + $0xc0] sm:$0xff]
                  %218 = vst [vmem:[%s192 + $0x60] sm:$0xff] %v217
                  %v219 = vld [vmem:[%s191 + $0xc8] sm:$0xff]
                  %220 = vst [vmem:[%s192 + $0x68] sm:$0xff] %v219
                  %v221 = vld [vmem:[%s191 + $0xe0] sm:$0xff]
                  %222 = vst [vmem:[%s192 + $0x70] sm:$0xff] %v221
                  %v223 = vld [vmem:[%s191 + $0xe8] sm:$0xff]
                  %224 = vst [vmem:[%s192 + $0x78] sm:$0xff] %v223
                  %v225 = vld [vmem:[%s191 + $0x100] sm:$0xff]
                  %226 = vst [vmem:[%s192 + $0x80] sm:$0xff] %v225
                  %v227 = vld [vmem:[%s191 + $0x108] sm:$0xff]
                  %228 = vst [vmem:[%s192 + $0x88] sm:$0xff] %v227
                  %v229 = vld [vmem:[%s191 + $0x120] sm:$0xff]
                  %230 = vst [vmem:[%s192 + $0x90] sm:$0xff] %v229
                  %v231 = vld [vmem:[%s191 + $0x128] sm:$0xff]
                  %232 = vst [vmem:[%s192 + $0x98] sm:$0xff] %v231
                  %v233 = vld [vmem:[%s191 + $0x140] sm:$0xff]
                  %234 = vst [vmem:[%s192 + $0xa0] sm:$0xff] %v233
                  %v235 = vld [vmem:[%s191 + $0x148] sm:$0xff]
                  %236 = vst [vmem:[%s192 + $0xa8] sm:$0xff] %v235
                  %v237 = vld [vmem:[%s191 + $0x160] sm:$0xff]
                  %238 = vst [vmem:[%s192 + $0xb0] sm:$0xff] %v237
                  %v239 = vld [vmem:[%s191 + $0x168] sm:$0xff]
                  %240 = vst [vmem:[%s192 + $0xb8] sm:$0xff] %v239
                  %v241 = vld [vmem:[%s191 + $0x180] sm:$0xff]
                  %242 = vst [vmem:[%s192 + $0xc0] sm:$0xff] %v241
                  %v243 = vld [vmem:[%s191 + $0x188] sm:$0xff]
                  %244 = vst [vmem:[%s192 + $0xc8] sm:$0xff] %v243
                  %v245 = vld [vmem:[%s191 + $0x1a0] sm:$0xff]
                  %246 = vst [vmem:[%s192 + $0xd0] sm:$0xff] %v245
                  %v247 = vld [vmem:[%s191 + $0x1a8] sm:$0xff]
                  %248 = vst [vmem:[%s192 + $0xd8] sm:$0xff] %v247
                  %v249 = vld [vmem:[%s191 + $0x1c0] sm:$0xff]
                  %250 = vst [vmem:[%s192 + $0xe0] sm:$0xff] %v249
                  %v251 = vld [vmem:[%s191 + $0x1c8] sm:$0xff]
                  %252 = vst [vmem:[%s192 + $0xe8] sm:$0xff] %v251
                  %v253 = vld [vmem:[%s191 + $0x1e0] sm:$0xff]
                  %254 = vst [vmem:[%s192 + $0xf0] sm:$0xff] %v253
                  %v255 = vld [vmem:[%s191 + $0x1e8] sm:$0xff]
                  %256 = vst [vmem:[%s192 + $0xf8] sm:$0xff] %v255
                  %v257 = vld [vmem:[%s191 + $0x200] sm:$0xff]
                  %258 = vst [vmem:[%s192 + $0x100] sm:$0xff] %v257
                  %v259 = vld [vmem:[%s191 + $0x208] sm:$0xff]
                  %260 = vst [vmem:[%s192 + $0x108] sm:$0xff] %v259
                  %v261 = vld [vmem:[%s191 + $0x220] sm:$0xff]
                  %262 = vst [vmem:[%s192 + $0x110] sm:$0xff] %v261
                  %v263 = vld [vmem:[%s191 + $0x228] sm:$0xff]
                  %264 = vst [vmem:[%s192 + $0x118] sm:$0xff] %v263
                  %v265 = vld [vmem:[%s191 + $0x240] sm:$0xff]
                  %266 = vst [vmem:[%s192 + $0x120] sm:$0xff] %v265
                  %v267 = vld [vmem:[%s191 + $0x248] sm:$0xff]
                  %268 = vst [vmem:[%s192 + $0x128] sm:$0xff] %v267
                  %v269 = vld [vmem:[%s191 + $0x260] sm:$0xff]
                  %270 = vst [vmem:[%s192 + $0x130] sm:$0xff] %v269
                  %v271 = vld [vmem:[%s191 + $0x268] sm:$0xff]
                  %272 = vst [vmem:[%s192 + $0x138] sm:$0xff] %v271
                $region48: #{nsloss_pallas.1} parent=42 // loop_footer
                  %s190 = sadd.s32 1, %s186
                $region49: #{nsloss_pallas.1} parent=42 // loop_footer_branch
                  %185 = sbr.rel target = $region45
                $region50: #{nsloss_pallas.1} parent=42 // loop_exit
                  _
              $region43: #{nsloss_pallas.1} parent=27 // pred_fallthru
                _
              // Predicated region
              $region51: #{nsloss_pallas.1} parent=27 // pred_check
                _
              $region52: #{nsloss_pallas.1} parent=27 // pred_check_branch
                %274 = sbr.rel target = $region54
              $region53: #{nsloss_pallas.1} parent=27 // pred_region
                _
              $region54: #{nsloss_pallas.1} parent=27 // pred_fallthru
                _
            $region28: #{nsloss_pallas.1} parent=23 // pred_fallthru
              _
            // Predicated region
            $region29: #{nsloss_pallas.1} parent=23 // pred_check
              _
            $region30: #{nsloss_pallas.1} parent=23 // pred_check_branch
              %93 = sbr.rel target = $region32
            $region31: #{nsloss_pallas.1} parent=23 // pred_region
              loop: start=0, step=1, limit=1
              $region33: #{nsloss_pallas.1} parent=31 // loop_pre_header
                _
              $region34: #{nsloss_pallas.1} parent=31 // loop_header
                %s96 = sphi 0, %s100
                %p97 = scmp.ge.s32.totalorder %s96, 1
                %s101 = sphi %s87, %s87
                %s102 = sphi %s84, %s84
              $region35: #{nsloss_pallas.1} parent=31 // loop_header_branch
                %99 = sbr.rel (%p97) target = $region39
              $region36: #{nsloss_pallas.1} parent=31 // loop_body
                %v103 = vld [vmem:[%s101] sm:$0xff]
                %104 = vst [vmem:[%s102] sm:$0xff] %v103
                %v105 = vld [vmem:[%s101 + $0x8] sm:$0xff]
                %106 = vst [vmem:[%s102 + $0x8] sm:$0xff] %v105
                %v107 = vld [vmem:[%s101 + $0x20] sm:$0xff]
                %108 = vst [vmem:[%s102 + $0x10] sm:$0xff] %v107
                %v109 = vld [vmem:[%s101 + $0x28] sm:$0xff]
                %110 = vst [vmem:[%s102 + $0x18] sm:$0xff] %v109
                %v111 = vld [vmem:[%s101 + $0x40] sm:$0xff]
                %112 = vst [vmem:[%s102 + $0x20] sm:$0xff] %v111
                %v113 = vld [vmem:[%s101 + $0x48] sm:$0xff]
                %114 = vst [vmem:[%s102 + $0x28] sm:$0xff] %v113
                %v115 = vld [vmem:[%s101 + $0x60] sm:$0xff]
                %116 = vst [vmem:[%s102 + $0x30] sm:$0xff] %v115
                %v117 = vld [vmem:[%s101 + $0x68] sm:$0xff]
                %118 = vst [vmem:[%s102 + $0x38] sm:$0xff] %v117
                %v119 = vld [vmem:[%s101 + $0x80] sm:$0xff]
                %120 = vst [vmem:[%s102 + $0x40] sm:$0xff] %v119
                %v121 = vld [vmem:[%s101 + $0x88] sm:$0xff]
                %122 = vst [vmem:[%s102 + $0x48] sm:$0xff] %v121
                %v123 = vld [vmem:[%s101 + $0xa0] sm:$0xff]
                %124 = vst [vmem:[%s102 + $0x50] sm:$0xff] %v123
                %v125 = vld [vmem:[%s101 + $0xa8] sm:$0xff]
                %126 = vst [vmem:[%s102 + $0x58] sm:$0xff] %v125
                %v127 = vld [vmem:[%s101 + $0xc0] sm:$0xff]
                %128 = vst [vmem:[%s102 + $0x60] sm:$0xff] %v127
                %v129 = vld [vmem:[%s101 + $0xc8] sm:$0xff]
                %130 = vst [vmem:[%s102 + $0x68] sm:$0xff] %v129
                %v131 = vld [vmem:[%s101 + $0xe0] sm:$0xff]
                %132 = vst [vmem:[%s102 + $0x70] sm:$0xff] %v131
                %v133 = vld [vmem:[%s101 + $0xe8] sm:$0xff]
                %134 = vst [vmem:[%s102 + $0x78] sm:$0xff] %v133
                %v135 = vld [vmem:[%s101 + $0x100] sm:$0xff]
                %136 = vst [vmem:[%s102 + $0x80] sm:$0xff] %v135
                %v137 = vld [vmem:[%s101 + $0x108] sm:$0xff]
                %138 = vst [vmem:[%s102 + $0x88] sm:$0xff] %v137
                %v139 = vld [vmem:[%s101 + $0x120] sm:$0xff]
                %140 = vst [vmem:[%s102 + $0x90] sm:$0xff] %v139
                %v141 = vld [vmem:[%s101 + $0x128] sm:$0xff]
                %142 = vst [vmem:[%s102 + $0x98] sm:$0xff] %v141
                %v143 = vld [vmem:[%s101 + $0x140] sm:$0xff]
                %144 = vst [vmem:[%s102 + $0xa0] sm:$0xff] %v143
                %v145 = vld [vmem:[%s101 + $0x148] sm:$0xff]
                %146 = vst [vmem:[%s102 + $0xa8] sm:$0xff] %v145
                %v147 = vld [vmem:[%s101 + $0x160] sm:$0xff]
                %148 = vst [vmem:[%s102 + $0xb0] sm:$0xff] %v147
                %v149 = vld [vmem:[%s101 + $0x168] sm:$0xff]
                %150 = vst [vmem:[%s102 + $0xb8] sm:$0xff] %v149
                %v151 = vld [vmem:[%s101 + $0x180] sm:$0xff]
                %152 = vst [vmem:[%s102 + $0xc0] sm:$0xff] %v151
                %v153 = vld [vmem:[%s101 + $0x188] sm:$0xff]
                %154 = vst [vmem:[%s102 + $0xc8] sm:$0xff] %v153
                %v155 = vld [vmem:[%s101 + $0x1a0] sm:$0xff]
                %156 = vst [vmem:[%s102 + $0xd0] sm:$0xff] %v155
                %v157 = vld [vmem:[%s101 + $0x1a8] sm:$0xff]
                %158 = vst [vmem:[%s102 + $0xd8] sm:$0xff] %v157
                %v159 = vld [vmem:[%s101 + $0x1c0] sm:$0xff]
                %160 = vst [vmem:[%s102 + $0xe0] sm:$0xff] %v159
                %v161 = vld [vmem:[%s101 + $0x1c8] sm:$0xff]
                %162 = vst [vmem:[%s102 + $0xe8] sm:$0xff] %v161
                %v163 = vld [vmem:[%s101 + $0x1e0] sm:$0xff]
                %164 = vst [vmem:[%s102 + $0xf0] sm:$0xff] %v163
                %v165 = vld [vmem:[%s101 + $0x1e8] sm:$0xff]
                %166 = vst [vmem:[%s102 + $0xf8] sm:$0xff] %v165
                %v167 = vld [vmem:[%s101 + $0x200] sm:$0xff]
                %168 = vst [vmem:[%s102 + $0x100] sm:$0xff] %v167
                %v169 = vld [vmem:[%s101 + $0x208] sm:$0xff]
                %170 = vst [vmem:[%s102 + $0x108] sm:$0xff] %v169
                %v171 = vld [vmem:[%s101 + $0x220] sm:$0xff]
                %172 = vst [vmem:[%s102 + $0x110] sm:$0xff] %v171
                %v173 = vld [vmem:[%s101 + $0x228] sm:$0xff]
                %174 = vst [vmem:[%s102 + $0x118] sm:$0xff] %v173
                %v175 = vld [vmem:[%s101 + $0x240] sm:$0xff]
                %176 = vst [vmem:[%s102 + $0x120] sm:$0xff] %v175
                %v177 = vld [vmem:[%s101 + $0x248] sm:$0xff]
                %178 = vst [vmem:[%s102 + $0x128] sm:$0xff] %v177
                %v179 = vld [vmem:[%s101 + $0x260] sm:$0xff]
                %180 = vst [vmem:[%s102 + $0x130] sm:$0xff] %v179
                %v181 = vld [vmem:[%s101 + $0x268] sm:$0xff]
                %182 = vst [vmem:[%s102 + $0x138] sm:$0xff] %v181
              $region37: #{nsloss_pallas.1} parent=31 // loop_footer
                %s100 = sadd.s32 1, %s96
              $region38: #{nsloss_pallas.1} parent=31 // loop_footer_branch
                %95 = sbr.rel target = $region34
              $region39: #{nsloss_pallas.1} parent=31 // loop_exit
                _
            $region32: #{nsloss_pallas.1} parent=23 // pred_fallthru
              _
          $region24: #{nsloss_pallas.1} parent=19 // pred_fallthru
            _
          %275 = vnop
        $region20: #{nsloss_pallas.1} parent=15 // pred_fallthru
          _
      $region16: #{nsloss_pallas.1} parent=5 // pred_fallthru
        _
      %p276 = scmp.le.s32.totalorder 1, %s7
      %p277 = scmp.lt.s32.totalorder %s7, 3
      %p278 = pnand %p276, %p277
      %p279 = pneg %p278
      // Predicated region
      $region55: #{nsloss_pallas.1} parent=5 // pred_check
        _
      $region56: #{nsloss_pallas.1} parent=5 // pred_check_branch
        %281 = sbr.rel (%p278) target = $region58
      $region57: #{nsloss_pallas.1} parent=5 // pred_region
        %s282 = ssub.s32 %s7, 1
        %s283 = sand.u32 %s20, 1
        %s284 = sand.u32 %s20, 1
        %s285 = smul.addr %s284, 320
        %s286 = scalar_lea.vmem [#allocation2], %s285
        // Predicated region
        $region59: #{nsloss_pallas.1} parent=57 // pred_check
          %p287 = pneg %p33
        $region60: #{nsloss_pallas.1} parent=57 // pred_check_branch
          %289 = sbr.rel (%p287) target = $region62
        $region61: #{nsloss_pallas.1} parent=57 // pred_region
          _
        $region62: #{nsloss_pallas.1} parent=57 // pred_fallthru
          _
        %s290 = sand.u32 %s20, 1
        %s291 = sand.u32 %s20, 1
        %s292 = smul.addr %s291, 320
        %s293 = scalar_lea.vmem [#allocation2], %s292
        %p294 = pneg %p33
        %p295 = pneg %p30
        %p296 = pneg %p59
        %p297 = pneg %p56
        %p298 = scmp.lt.s32.totalorder %s12, 1
        %s299 = scalar_select %p298, %s12, 1
        %s300 = smul.addr %s299, 8
        %s301 = scalar_lea.vmem %s1, %s300
        %s302 = smul.u32 2, %s12
        %p303 = scmp.lt.s32.totalorder %s12, 1
        %s304 = scalar_select %p303, %s12, 1
        %s305 = smul.addr %s304, 8
        %s306 = scalar_lea.vmem %s1, %s305
        %s307 = sadd.s32 0, 64
        %s308 = scalar_lea.vmem %s286, %s307 [#allocation2]
        %v309 = vld [vmem:[%s308] sm:$0xff]
        %v310 = vadd.f32 %v309, 273.15
        %s311 = sadd.s32 0, 48
        %s312 = scalar_lea.vmem %s286, %s311 [#allocation2]
        %v313 = vld [vmem:[%s312] sm:$0xff]
        %v314 = vmul.f32 %v313, 3.484484
        %v315 = vrcp.pop %v310
        %v316 = vmul.f32 %v314, %v315
        %v317 = vmul.f32 %v310, 0.0034704148
        %v318 = vadd.f32 %v310, 110.4
        %v319 = vrcp.pop %v318
        %v320 = vmul.f32 0.0005810859, %v319
        %v321 = vrsqrt.pop %v317
        %v322 = vmul.f32 %v317, %v321
        %vm323 = vcmp.eq.f32.partialorder %v317, inf
        %v324 = vsel %vm323, %v317, %v322
        %vm325 = vcmp.eq.f32.partialorder %v317, 0.0
        %v326 = vand.u32 %v317, 2147483648
        %v327 = vsel %vm325, %v326, %v324
        %v328 = vmul.f32 %v317, %v327
        %v329 = vmul.f32 %v320, %v328
        %s330 = sadd.s32 0, 160
        %s331 = scalar_lea.vmem %s286, %s330 [#allocation2]
        %v332 = vld [vmem:[%s331] sm:$0xff]
        %v333 = vld [vmem:[%s286] sm:$0xff]
        %v334 = vsub.f32 %v332, %v333
        %v335 = vmul.f32 %v334, 0.0003135712
        %s336 = sadd.s32 0, 112
        %s337 = scalar_lea.vmem %s286, %s336 [#allocation2]
        %v338 = vld [vmem:[%s337] sm:$0xff]
        %s339 = sadd.s32 0, 208
        %s340 = scalar_lea.vmem %s286, %s339 [#allocation2]
        %v341 = vld [vmem:[%s340] sm:$0xff]
        %v342 = vsub.f32 %v338, %v341
        %v343 = vmul.f32 %v342, 0.0003135712
        %s344 = sadd.s32 0, 80
        %s345 = scalar_lea.vmem %s286, %s344 [#allocation2]
        %v346 = vld [vmem:[%s345] sm:$0xff]
        %s347 = sadd.s32 0, 96
        %s348 = scalar_lea.vmem %s286, %s347 [#allocation2]
        %v349 = vld [vmem:[%s348] sm:$0xff]
        %s350 = sadd.s32 0, 128
        %s351 = scalar_lea.vmem %s286, %s350 [#allocation2]
        %v352 = vld [vmem:[%s351] sm:$0xff]
        %s353 = sadd.s32 0, 224
        %s354 = scalar_lea.vmem %s286, %s353 [#allocation2]
        %v355 = vld [vmem:[%s354] sm:$0xff]
        %s356 = sadd.s32 0, 176
        %s357 = scalar_lea.vmem %s286, %s356 [#allocation2]
        %v358 = vld [vmem:[%s357] sm:$0xff]
        %s359 = sadd.s32 0, 16
        %s360 = scalar_lea.vmem %s286, %s359 [#allocation2]
        %v361 = vld [vmem:[%s360] sm:$0xff]
        %s362 = sadd.s32 0, 144
        %s363 = scalar_lea.vmem %s286, %s362 [#allocation2]
        %v364 = vld [vmem:[%s363] sm:$0xff]
        %s365 = sadd.s32 0, 240
        %s366 = scalar_lea.vmem %s286, %s365 [#allocation2]
        %v367 = vld [vmem:[%s366] sm:$0xff]
        %s368 = sadd.s32 0, 192
        %s369 = scalar_lea.vmem %s286, %s368 [#allocation2]
        %v370 = vld [vmem:[%s369] sm:$0xff]
        %s371 = sadd.s32 0, 32
        %s372 = scalar_lea.vmem %s286, %s371 [#allocation2]
        %v373 = vld [vmem:[%s372] sm:$0xff]
        %s374 = sadd.s32 0, 256
        %s375 = scalar_lea.vmem %s286, %s374 [#allocation2]
        %v376 = vld [vmem:[%s375] sm:$0xff]
        %s377 = sadd.s32 0, 272
        %s378 = scalar_lea.vmem %s286, %s377 [#allocation2]
        %v379 = vld [vmem:[%s378] sm:$0xff]
        %v380 = vsub.f32 %v376, %v379
        %v381 = vmul.f32 %v380, 0.00013888889
        %s382 = sadd.s32 0, 288
        %s383 = scalar_lea.vmem %s286, %s382 [#allocation2]
        %v384 = vld [vmem:[%s383] sm:$0xff]
        %s385 = sadd.s32 0, 304
        %s386 = scalar_lea.vmem %s286, %s385 [#allocation2]
        %v387 = vld [vmem:[%s386] sm:$0xff]
        %v388 = vsub.f32 %v384, %v387
        %v389 = vmul.f32 %v388, 0.00013888889
        %v390 = vsub.f32 %v352, %v355
        %v391 = vmul.f32 %v390, 3.1357118e-07
        %v392 = vsub.f32 %v358, %v361
        %v393 = vmul.f32 %v392, 3.1357118e-07
        %v394 = vmul.f32 %v346, 2.0
        %v395 = vsub.f32 %v352, %v394
        %v396 = vadd.f32 %v395, %v355
        %v397 = vmul.f32 %v396, 3.9330757e-13
        %v398 = vsub.f32 %v358, %v394
        %v399 = vadd.f32 %v398, %v361
        %v400 = vmul.f32 %v399, 3.9330757e-13
        %v401 = vsub.f32 %v364, %v367
        %v402 = vmul.f32 %v401, 3.1357118e-07
        %v403 = vsub.f32 %v370, %v373
        %v404 = vmul.f32 %v403, 3.1357118e-07
        %v405 = vmul.f32 %v349, 2.0
        %v406 = vsub.f32 %v364, %v405
        %v407 = vadd.f32 %v406, %v367
        %v408 = vmul.f32 %v407, 3.9330757e-13
        %v409 = vsub.f32 %v370, %v405
        %v410 = vadd.f32 %v409, %v373
        %v411 = vmul.f32 %v410, 3.9330757e-13
        %v412 = vmul.f32 %v346, %v391
        %v413 = vadd.f32 %v381, %v412
        %v414 = vmul.f32 %v349, %v393
        %v415 = vadd.f32 %v413, %v414
        %v416 = vmul.f32 %v316, %v415
        %v417 = vadd.f32 %v416, %v343
        %v418 = vadd.f32 %v397, %v400
        %v419 = vmul.f32 %v329, %v418
        %v420 = vsub.f32 %v417, %v419
        %v421 = vmul.f32 %v346, %v402
        %v422 = vadd.f32 %v389, %v421
        %v423 = vmul.f32 %v349, %v404
        %v424 = vadd.f32 %v422, %v423
        %v425 = vmul.f32 %v316, %v424
        %v426 = vadd.f32 %v425, %v335
        %v427 = vadd.f32 %v408, %v411
        %v428 = vmul.f32 %v329, %v427
        %v429 = vsub.f32 %v426, %v428
        %v430 = vmul.f32 %v420, %v420
        %v431 = vmul.f32 %v429, %v429
        %v432 = vadd.f32 %v430, %v431
        %v433 = vadd.f32 %v432, 0.0
        %s434 = sadd.s32 8, 64
        %s435 = scalar_lea.vmem %s286, %s434 [#allocation2]
        %v436 = vld [vmem:[%s435] sm:$0xff]
        %v437 = vadd.f32 %v436, 273.15
        %s438 = sadd.s32 8, 48
        %s439 = scalar_lea.vmem %s286, %s438 [#allocation2]
        %v440 = vld [vmem:[%s439] sm:$0xff]
        %v441 = vmul.f32 %v440, 3.484484
        %v442 = vrcp.pop %v437
        %v443 = vmul.f32 %v441, %v442
        %v444 = vmul.f32 %v437, 0.0034704148
        %v445 = vadd.f32 %v437, 110.4
        %v446 = vrcp.pop %v445
        %v447 = vmul.f32 0.0005810859, %v446
        %v448 = vrsqrt.pop %v444
        %v449 = vmul.f32 %v444, %v448
        %vm450 = vcmp.eq.f32.partialorder %v444, inf
        %v451 = vsel %vm450, %v444, %v449
        %vm452 = vcmp.eq.f32.partialorder %v444, 0.0
        %v453 = vand.u32 %v444, 2147483648
        %v454 = vsel %vm452, %v453, %v451
        %v455 = vmul.f32 %v444, %v454
        %v456 = vmul.f32 %v447, %v455
        %s457 = sadd.s32 8, 160
        %s458 = scalar_lea.vmem %s286, %s457 [#allocation2]
        %v459 = vld [vmem:[%s458] sm:$0xff]
        %s460 = scalar_lea.vmem %s286, 8 [#allocation2]
        %v461 = vld [vmem:[%s460] sm:$0xff]
        %v462 = vsub.f32 %v459, %v461
        %v463 = vmul.f32 %v462, 0.0003135712
        %s464 = sadd.s32 8, 112
        %s465 = scalar_lea.vmem %s286, %s464 [#allocation2]
        %v466 = vld [vmem:[%s465] sm:$0xff]
        %s467 = sadd.s32 8, 208
        %s468 = scalar_lea.vmem %s286, %s467 [#allocation2]
        %v469 = vld [vmem:[%s468] sm:$0xff]
        %v470 = vsub.f32 %v466, %v469
        %v471 = vmul.f32 %v470, 0.0003135712
        %s472 = sadd.s32 8, 80
        %s473 = scalar_lea.vmem %s286, %s472 [#allocation2]
        %v474 = vld [vmem:[%s473] sm:$0xff]
        %s475 = sadd.s32 8, 96
        %s476 = scalar_lea.vmem %s286, %s475 [#allocation2]
        %v477 = vld [vmem:[%s476] sm:$0xff]
        %s478 = sadd.s32 8, 128
        %s479 = scalar_lea.vmem %s286, %s478 [#allocation2]
        %v480 = vld [vmem:[%s479] sm:$0xff]
        %s481 = sadd.s32 8, 224
        %s482 = scalar_lea.vmem %s286, %s481 [#allocation2]
        %v483 = vld [vmem:[%s482] sm:$0xff]
        %s484 = sadd.s32 8, 176
        %s485 = scalar_lea.vmem %s286, %s484 [#allocation2]
        %v486 = vld [vmem:[%s485] sm:$0xff]
        %s487 = sadd.s32 8, 16
        %s488 = scalar_lea.vmem %s286, %s487 [#allocation2]
        %v489 = vld [vmem:[%s488] sm:$0xff]
        %s490 = sadd.s32 8, 144
        %s491 = scalar_lea.vmem %s286, %s490 [#allocation2]
        %v492 = vld [vmem:[%s491] sm:$0xff]
        %s493 = sadd.s32 8, 240
        %s494 = scalar_lea.vmem %s286, %s493 [#allocation2]
        %v495 = vld [vmem:[%s494] sm:$0xff]
        %s496 = sadd.s32 8, 192
        %s497 = scalar_lea.vmem %s286, %s496 [#allocation2]
        %v498 = vld [vmem:[%s497] sm:$0xff]
        %s499 = sadd.s32 8, 32
        %s500 = scalar_lea.vmem %s286, %s499 [#allocation2]
        %v501 = vld [vmem:[%s500] sm:$0xff]
        %s502 = sadd.s32 8, 256
        %s503 = scalar_lea.vmem %s286, %s502 [#allocation2]
        %v504 = vld [vmem:[%s503] sm:$0xff]
        %s505 = sadd.s32 8, 272
        %s506 = scalar_lea.vmem %s286, %s505 [#allocation2]
        %v507 = vld [vmem:[%s506] sm:$0xff]
        %v508 = vsub.f32 %v504, %v507
        %v509 = vmul.f32 %v508, 0.00013888889
        %s510 = sadd.s32 8, 288
        %s511 = scalar_lea.vmem %s286, %s510 [#allocation2]
        %v512 = vld [vmem:[%s511] sm:$0xff]
        %s513 = sadd.s32 8, 304
        %s514 = scalar_lea.vmem %s286, %s513 [#allocation2]
        %v515 = vld [vmem:[%s514] sm:$0xff]
        %v516 = vsub.f32 %v512, %v515
        %v517 = vmul.f32 %v516, 0.00013888889
        %v518 = vsub.f32 %v480, %v483
        %v519 = vmul.f32 %v518, 3.1357118e-07
        %v520 = vsub.f32 %v486, %v489
        %v521 = vmul.f32 %v520, 3.1357118e-07
        %v522 = vmul.f32 %v474, 2.0
        %v523 = vsub.f32 %v480, %v522
        %v524 = vadd.f32 %v523, %v483
        %v525 = vmul.f32 %v524, 3.9330757e-13
        %v526 = vsub.f32 %v486, %v522
        %v527 = vadd.f32 %v526, %v489
        %v528 = vmul.f32 %v527, 3.9330757e-13
        %v529 = vsub.f32 %v492, %v495
        %v530 = vmul.f32 %v529, 3.1357118e-07
        %v531 = vsub.f32 %v498, %v501
        %v532 = vmul.f32 %v531, 3.1357118e-07
        %v533 = vmul.f32 %v477, 2.0
        %v534 = vsub.f32 %v492, %v533
        %v535 = vadd.f32 %v534, %v495
        %v536 = vmul.f32 %v535, 3.9330757e-13
        %v537 = vsub.f32 %v498, %v533
        %v538 = vadd.f32 %v537, %v501
        %v539 = vmul.f32 %v538, 3.9330757e-13
        %v540 = vmul.f32 %v474, %v519
        %v541 = vadd.f32 %v509, %v540
        %v542 = vmul.f32 %v477, %v521
        %v543 = vadd.f32 %v541, %v542
        %v544 = vmul.f32 %v443, %v543
        %v545 = vadd.f32 %v544, %v471
        %v546 = vadd.f32 %v525, %v528
        %v547 = vmul.f32 %v456, %v546
        %v548 = vsub.f32 %v545, %v547
        %v549 = vmul.f32 %v474, %v530
        %v550 = vadd.f32 %v517, %v549
        %v551 = vmul.f32 %v477, %v532
        %v552 = vadd.f32 %v550, %v551
        %v553 = vmul.f32 %v443, %v552
        %v554 = vadd.f32 %v553, %v463
        %v555 = vadd.f32 %v536, %v539
        %v556 = vmul.f32 %v456, %v555
        %v557 = vsub.f32 %v554, %v556
        %v558 = vmul.f32 %v548, %v548
        %v559 = vmul.f32 %v557, %v557
        %v560 = vadd.f32 %v558, %v559
        %v561 = vadd.f32 %v433, %v560
        %562 = vst [vmem:[%s306] sm:$0xff] %v561
        %p563 = scmp.lt.s32.totalorder %s12, 1
        %s564 = scalar_select %p563, %s12, 1
        %s565 = smul.addr %s564, 8
        %s566 = scalar_lea.vmem %s1, %s565
        // Predicated region
        $region63: #{nsloss_pallas.1} parent=57 // pred_check
          %p567 = pneg %p56
        $region64: #{nsloss_pallas.1} parent=57 // pred_check_branch
          %569 = sbr.rel (%p567) target = $region66
        $region65: #{nsloss_pallas.1} parent=57 // pred_region
          _
        $region66: #{nsloss_pallas.1} parent=57 // pred_fallthru
          _
      $region58: #{nsloss_pallas.1} parent=5 // pred_fallthru
        _
      %p570 = scmp.le.s32.totalorder 2, %s7
      // Predicated region
      $region67: #{nsloss_pallas.1} parent=5 // pred_check
        %p571 = pneg %p570
      $region68: #{nsloss_pallas.1} parent=5 // pred_check_branch
        %573 = sbr.rel (%p571) target = $region70
      $region69: #{nsloss_pallas.1} parent=5 // pred_region
        %s574 = ssub.s32 %s7, 2
        // Predicated region
        $region71: #{nsloss_pallas.1} parent=69 // pred_check
          %p575 = pneg %p62
        $region72: #{nsloss_pallas.1} parent=69 // pred_check_branch
          %577 = sbr.rel (%p575) target = $region74
        $region73: #{nsloss_pallas.1} parent=69 // pred_region
          %p578 = scmp.lt.s32.totalorder %s13, 1
          %s579 = scalar_select %p578, %s13, 1
          %s580 = smul.addr %s579, 8
          %s581 = scalar_lea.vmem %s1, %s580
        $region74: #{nsloss_pallas.1} parent=69 // pred_fallthru
          _
      $region70: #{nsloss_pallas.1} parent=5 // pred_fallthru
        _
    $region6: #{nsloss_pallas.1} parent=1 // loop_footer
      %s11 = sadd.s32 1, %s7
    $region7: #{nsloss_pallas.1} parent=1 // loop_footer_branch
      %6 = sbr.rel target = $region3
    $region8: #{nsloss_pallas.1} parent=1 // loop_exit
      _

</llo_original>
